<compile_context>
chip_gen: v7x
topology: tpu7x:2x2x1
jax: 0.10.0
libtpu: 0.0.40
codegen_flags: <defaults>
</compile_context>

<pallas_src>
import math
import numpy as np
import jax
import jax.numpy as jnp
from jax.experimental import pallas as pl
from jax.experimental.pallas import tpu as pltpu


# ----------------------------- config (small) -----------------------------
BATCH = 2
SEQ = 8
HIDDEN = 32
NUM_HEADS = 4
NUM_KV_HEADS = 2
HEAD_DIM = HIDDEN // NUM_HEADS             # 8
NUM_KV_GROUPS = NUM_HEADS // NUM_KV_HEADS  # 2
MROPE_SECTION = [1, 1, 2]                  # sums to HEAD_DIM // 2
ROPE_THETA = 10000.0
NEG_INF = -1e9
SCALE = 1.0 / math.sqrt(HEAD_DIM)
Q_WIDTH = NUM_HEADS * HEAD_DIM             # 32
KV_WIDTH = NUM_KV_HEADS * HEAD_DIM         # 16
TOTAL = BATCH * SEQ                        # 16 flattened rows
QKV_WIDTH = Q_WIDTH + 2 * KV_WIDTH         # 64


# --------------------- host-built compile-time constants ---------------------
def _rot_half_matrix_np(width, head_dim):
    """Constant R with (x @ R) == per-head rotate_half(x) for x of shape (*, width)."""
    r = np.arange(width)[:, None]
    c = np.arange(width)[None, :]
    same_head = (r // head_dim) == (c // head_dim)
    half = head_dim // 2
    m = np.zeros((width, width), np.float32)
    m[same_head & ((r - c) == half)] = -1.0   # row = col + D/2 -> -1
    m[same_head & ((c - r) == half)] = 1.0    # row = col - D/2 -> +1
    return m


def _block_causal_bias_np(batch, seq):
    """(B*S, B*S) bias: 0 where same batch AND causal, NEG_INF elsewhere."""
    m = batch * seq
    r = np.arange(m)[:, None]
    c = np.arange(m)[None, :]
    ok = ((r // seq) == (c // seq)) & ((r % seq) >= (c % seq))
    return np.where(ok, 0.0, NEG_INF).astype(np.float32)


def _rotate_half(x):
    d = x.shape[-1]
    return jnp.concatenate([-x[..., d // 2:], x[..., : d // 2]], axis=-1)


# ------------------------------ Pallas kernel ------------------------------
def _attention_kernel(x_ref, cos_ref, sin_ref, wqkv_ref, bqkv_ref, rot_ref,
                      bias_ref, wo_ref, o_ref, attn_sc):
    # x_ref:    (B*S, H)           f32
    # cos/sin:  (B*S, D)           f32 (de-duplicated mrope cos/sin)
    # wqkv_ref: (H, 64)            bf16 (wq|wk|wv);  bqkv_ref: (1, 64) f32
    # rot_ref:  (nH*D, nH*D)       bf16 block-diag rotate_half permutation
    # bias_ref: (G*B*S, B*S)       f32 block-diag causal bias, pre-tiled G times
    # wo_ref:   (nH*D, H)          bf16
    # o_ref:    (B*S, H)           f32
    # attn_sc:  (B*S, nH*D)        f32 VMEM scratch (per-head attention outputs)
    x = x_ref[...].astype(jnp.bfloat16)

    # ---- fused q/k/v projection: one bf16 MXU push, f32 accumulation ----
    qkv = jnp.dot(x, wqkv_ref[...], preferred_element_type=jnp.float32) + bqkv_ref[...]
    q = qkv[:, :Q_WIDTH]                                   # (B*S, 32) f32
    k = qkv[:, Q_WIDTH:Q_WIDTH + KV_WIDTH]                 # (B*S, 16) f32
    v = qkv[:, Q_WIDTH + KV_WIDTH:]                        # (B*S, 16) f32

    # ---- head-tiled cos/sin: single-vreg lane tile, done once ----
    cos_q = jnp.concatenate([cos_ref[...]] * NUM_HEADS, axis=-1)   # (B*S, 32)
    sin_q = jnp.concatenate([sin_ref[...]] * NUM_HEADS, axis=-1)
    cos_k = cos_q[:, :KV_WIDTH]                                    # periodic reuse
    sin_k = sin_q[:, :KV_WIDTH]

    # ---- RoPE: rotate_half via bf16 MXU permutation, cos/sin math in f32 ----
    rot = rot_ref[...]
    q_rot = jnp.dot(q.astype(jnp.bfloat16), rot,
                    preferred_element_type=jnp.float32)
    k_rot = jnp.dot(k.astype(jnp.bfloat16), rot[:KV_WIDTH, :KV_WIDTH],
                    preferred_element_type=jnp.float32)
    q = (q * cos_q + q_rot * sin_q) * SCALE                # fold 1/sqrt(D) into q
    k = k * cos_k + k_rot * sin_k

    bias = bias_ref[...]                                   # (G*B*S, B*S)

    # ---- GQA attention, batched per kv head ----
    # Query heads sharing a kv head are stacked along rows, so QK^T and PV are
    # one MXU push each per kv head.
    for g in range(NUM_KV_HEADS):                          # static unroll (2)
        qg = jnp.concatenate(
            [q[:, (g * NUM_KV_GROUPS + j) * HEAD_DIM:
                  (g * NUM_KV_GROUPS + j + 1) * HEAD_DIM]
             for j in range(NUM_KV_GROUPS)],
            axis=0).astype(jnp.bfloat16)                   # (G*B*S, D)
        kg = k[:, g * HEAD_DIM:(g + 1) * HEAD_DIM].astype(jnp.bfloat16)   # (B*S, D)
        vg = v[:, g * HEAD_DIM:(g + 1) * HEAD_DIM].astype(jnp.bfloat16)   # (B*S, D)

        s = jax.lax.dot_general(qg, kg, (((1,), (1,)), ((), ())),
                                preferred_element_type=jnp.float32)       # (G*B*S, B*S)
        s = s + bias
        s = s - jnp.max(s, axis=-1, keepdims=True)
        p = jnp.exp(s)                                     # f32 softmax
        p = p * pl.reciprocal(jnp.sum(p, axis=-1, keepdims=True), approx=True)
        og = jnp.dot(p.astype(jnp.bfloat16), vg,
                     preferred_element_type=jnp.float32)   # (G*B*S, D)

        for j in range(NUM_KV_GROUPS):                     # unstack rows -> scratch lanes
            h = g * NUM_KV_GROUPS + j
            attn_sc[:, h * HEAD_DIM:(h + 1) * HEAD_DIM] = og[j * TOTAL:(j + 1) * TOTAL, :]

    # ---- fused o_proj: single (B*S, nH*D) @ (nH*D, H) push ----
    o_ref[...] = jnp.dot(attn_sc[...].astype(jnp.bfloat16), wo_ref[...],
                         preferred_element_type=jnp.float32)


def qwen2vl_attention_pallas(x, cos_m, sin_m, wq, bq, wk, bk, wv, bv, wo):
    B, S, H = x.shape
    M = B * S

    # Flattened, lane-dense 2-D layouts (no leading unit dims).
    x2 = x.reshape(M, H)
    cos2 = cos_m.reshape(M, HEAD_DIM)
    sin2 = sin_m.reshape(M, HEAD_DIM)

    # Fused QKV weights / biases; bf16 weight operands (halved DMA / VMEM).
    w_qkv = jnp.concatenate([wq, wk, wv], axis=1).astype(jnp.bfloat16)   # (H, 64)
    b_qkv = jnp.concatenate([bq, bk, bv], axis=1)                        # (1, 64) f32
    wo_b = wo.astype(jnp.bfloat16)                                       # (32, H)

    # Host-built constants: rotate_half permutation (exact 0/±1 in bf16) and
    # the block-diagonal causal bias pre-tiled for the stacked-head rows.
    rot = jnp.asarray(_rot_half_matrix_np(Q_WIDTH, HEAD_DIM), jnp.bfloat16)
    bias = jnp.asarray(np.tile(_block_causal_bias_np(B, S), (NUM_KV_GROUPS, 1)),
                       jnp.float32)                                      # (G*M, M)

    vmem = pl.BlockSpec(memory_space=pltpu.MemorySpace.VMEM)
    out2 = pl.pallas_call(
        _attention_kernel,
        out_shape=jax.ShapeDtypeStruct((M, H), jnp.float32),
        in_specs=[vmem] * 8,
        out_specs=vmem,
        scratch_shapes=[pltpu.VMEM((M, Q_WIDTH), jnp.float32)],
    )(x2, cos2, sin2, w_qkv, b_qkv, rot, bias, wo_b)
    return out2.reshape(B, S, H)


# ------------------------- glue: mrope cos/sin merge -------------------------
def build_mrope_cos_sin(position_ids):
    """position_ids: (3, B, S) int32 -> merged cos/sin of shape (B, S, HEAD_DIM)."""
    D = HEAD_DIM
    inv_freq = 1.0 / (ROPE_THETA ** (jnp.arange(0, D, 2, dtype=jnp.float32) / D))
    freqs = position_ids.astype(jnp.float32)[..., None] * inv_freq      # (3,B,S,D/2)
    emb = jnp.concatenate([freqs, freqs], axis=-1)                      # (3,B,S,D)
    cos, sin = jnp.cos(emb), jnp.sin(emb)
    sections = MROPE_SECTION * 2                                        # len-6, sums to D
    idx = np.cumsum(sections)[:-1]
    cos_chunks = jnp.split(cos, idx, axis=-1)
    sin_chunks = jnp.split(sin, idx, axis=-1)
    cos_m = jnp.concatenate([c[i % 3] for i, c in enumerate(cos_chunks)], axis=-1)
    sin_m = jnp.concatenate([s[i % 3] for i, s in enumerate(sin_chunks)], axis=-1)
    return cos_m, sin_m                                                 # (B,S,D)


# ------------------------------ pure-JAX reference ------------------------------
def reference(x, cos_m, sin_m, wq, bq, wk, bk, wv, bv, wo):
    B, S, H = x.shape
    D = HEAD_DIM
    q = x @ wq + bq
    k = x @ wk + bk
    v = x @ wv + bv
    q = q.reshape(B, S, NUM_HEADS, D).transpose(0, 2, 1, 3)
    k = k.reshape(B, S, NUM_KV_HEADS, D).transpose(0, 2, 1, 3)
    v = v.reshape(B, S, NUM_KV_HEADS, D).transpose(0, 2, 1, 3)
    cos = cos_m[:, None]
    sin = sin_m[:, None]
    q = q * cos + _rotate_half(q) * sin
    k = k * cos + _rotate_half(k) * sin
    k = jnp.repeat(k, NUM_KV_GROUPS, axis=1)
    v = jnp.repeat(v, NUM_KV_GROUPS, axis=1)
    causal = jnp.arange(S)[:, None] >= jnp.arange(S)[None, :]
    mask = jnp.where(causal, 0.0, NEG_INF)
    s = jnp.einsum("bhqd,bhkd->bhqk", q, k) * SCALE + mask[None, None]
    p = jax.nn.softmax(s, axis=-1)
    a = jnp.einsum("bhqk,bhkd->bhqd", p, v)
    a = a.transpose(0, 2, 1, 3).reshape(B, S, NUM_HEADS * D)
    return a @ wo


# ---------------------------------- main ----------------------------------
if __name__ == "__main__":
    key = jax.random.PRNGKey(0)
    ks = jax.random.split(key, 8)

    x = jax.random.normal(ks[0], (BATCH, SEQ, HIDDEN), jnp.float32)

    # nn.Linear params, stored pre-transposed as (in, out)
    wq = 0.05 * jax.random.normal(ks[1], (HIDDEN, Q_WIDTH), jnp.float32)
    wk = 0.05 * jax.random.normal(ks[2], (HIDDEN, KV_WIDTH), jnp.float32)
    wv = 0.05 * jax.random.normal(ks[3], (HIDDEN, KV_WIDTH), jnp.float32)
    wo = 0.05 * jax.random.normal(ks[4], (Q_WIDTH, HIDDEN), jnp.float32)
    bq = 0.01 * jax.random.normal(ks[5], (1, Q_WIDTH), jnp.float32)
    bk = 0.01 * jax.random.normal(ks[6], (1, KV_WIDTH), jnp.float32)
    bv = 0.01 * jax.random.normal(ks[7], (1, KV_WIDTH), jnp.float32)

    # multimodal position ids (3 = temporal/height/width), deterministic but distinct
    pos = jnp.arange(SEQ, dtype=jnp.int32)
    position_ids = jnp.stack([pos, pos + 1, pos + 2], axis=0)[:, None, :]   # (3,1,S)
    position_ids = jnp.broadcast_to(position_ids, (3, BATCH, SEQ))
    cos_m, sin_m = build_mrope_cos_sin(position_ids)                        # (B,S,D)

    out = qwen2vl_attention_pallas(x, cos_m, sin_m, wq, bq, wk, bk, wv, bv, wo)
    out = jax.block_until_ready(out)

    ref = reference(x, cos_m, sin_m, wq, bq, wk, bk, wv, bv, wo)
    assert out.shape == (BATCH, SEQ, HIDDEN)
    # bf16 MXU operands + approx EUP reciprocal vs. a pure-f32 reference.
    np.testing.assert_allclose(np.asarray(out), np.asarray(ref), rtol=2e-2, atol=2e-2)

    print("KERNEL_OK")
</pallas_src>

<mosaic_0001>
module attributes {stable_mosaic.version = 11 : i64} {
  func.func @_attention_kernel(%arg0: memref<16x32xf32, #tpu.memory_space<vmem>>, %arg1: memref<16x8xf32, #tpu.memory_space<vmem>>, %arg2: memref<16x8xf32, #tpu.memory_space<vmem>>, %arg3: memref<32x64xbf16, #tpu.memory_space<vmem>>, %arg4: memref<1x64xf32, #tpu.memory_space<vmem>>, %arg5: memref<32x32xbf16, #tpu.memory_space<vmem>>, %arg6: memref<32x16xf32, #tpu.memory_space<vmem>>, %arg7: memref<32x32xbf16, #tpu.memory_space<vmem>>, %arg8: memref<16x32xf32, #tpu.memory_space<vmem>>, %arg9: memref<16x32xf32, #tpu.memory_space<vmem>>) attributes {dimension_semantics = [], scalar_prefetch = 0 : i64, scratch_operands = 1 : i64, tpu.core_type = #tpu.core_type<tc>} {
    %c0 = arith.constant 0 : index
    %c0_0 = arith.constant 0 : index
    %0 = vector.load %arg0[%c0, %c0_0] : memref<16x32xf32, #tpu.memory_space<vmem>>, vector<16x32xf32>
    %1 = arith.truncf %0 : vector<16x32xf32> to vector<16x32xbf16>
    %c0_1 = arith.constant 0 : index
    %c0_2 = arith.constant 0 : index
    %2 = vector.load %arg3[%c0_1, %c0_2] : memref<32x64xbf16, #tpu.memory_space<vmem>>, vector<32x64xbf16>
    %cst = arith.constant dense<0.000000e+00> : vector<16x64xf32>
    %3 = tpu.matmul %1, %2, %cst {dimension_numbers = #tpu.dot_dimension_numbers<[1], [0], [0], [1], [0, 0, 1, 1], [], []>} : vector<16x32xbf16>, vector<32x64xbf16>, vector<16x64xf32> -> vector<16x64xf32>
    %c0_3 = arith.constant 0 : index
    %c0_4 = arith.constant 0 : index
    %4 = vector.load %arg4[%c0_3, %c0_4] : memref<1x64xf32, #tpu.memory_space<vmem>>, vector<1x64xf32>
    %5 = vector.broadcast %4 : vector<1x64xf32> to vector<16x64xf32>
    %6 = arith.addf %3, %5 : vector<16x64xf32>
    %7 = vector.extract_strided_slice %6 {offsets = [0, 0], sizes = [16, 32], strides = [1, 1]} : vector<16x64xf32> to vector<16x32xf32>
    %8 = vector.extract_strided_slice %6 {offsets = [0, 32], sizes = [16, 16], strides = [1, 1]} : vector<16x64xf32> to vector<16x16xf32>
    %9 = vector.extract_strided_slice %6 {offsets = [0, 48], sizes = [16, 16], strides = [1, 1]} : vector<16x64xf32> to vector<16x16xf32>
    %c0_5 = arith.constant 0 : index
    %c0_6 = arith.constant 0 : index
    %10 = vector.load %arg1[%c0_5, %c0_6] : memref<16x8xf32, #tpu.memory_space<vmem>>, vector<16x8xf32>
    %11 = tpu.concatenate %10, %10, %10, %10 in 1 : vector<16x8xf32>, vector<16x8xf32>, vector<16x8xf32>, vector<16x8xf32> -> vector<16x32xf32>
    %c0_7 = arith.constant 0 : index
    %c0_8 = arith.constant 0 : index
    %12 = vector.load %arg2[%c0_7, %c0_8] : memref<16x8xf32, #tpu.memory_space<vmem>>, vector<16x8xf32>
    %13 = tpu.concatenate %12, %12, %12, %12 in 1 : vector<16x8xf32>, vector<16x8xf32>, vector<16x8xf32>, vector<16x8xf32> -> vector<16x32xf32>
    %14 = vector.extract_strided_slice %11 {offsets = [0, 0], sizes = [16, 16], strides = [1, 1]} : vector<16x32xf32> to vector<16x16xf32>
    %15 = vector.extract_strided_slice %13 {offsets = [0, 0], sizes = [16, 16], strides = [1, 1]} : vector<16x32xf32> to vector<16x16xf32>
    %c0_9 = arith.constant 0 : index
    %c0_10 = arith.constant 0 : index
    %16 = vector.load %arg5[%c0_9, %c0_10] : memref<32x32xbf16, #tpu.memory_space<vmem>>, vector<32x32xbf16>
    %17 = arith.truncf %7 : vector<16x32xf32> to vector<16x32xbf16>
    %cst_11 = arith.constant dense<0.000000e+00> : vector<16x32xf32>
    %18 = tpu.matmul %17, %16, %cst_11 {dimension_numbers = #tpu.dot_dimension_numbers<[1], [0], [0], [1], [0, 0, 1, 1], [], []>} : vector<16x32xbf16>, vector<32x32xbf16>, vector<16x32xf32> -> vector<16x32xf32>
    %19 = arith.truncf %8 : vector<16x16xf32> to vector<16x16xbf16>
    %20 = vector.extract_strided_slice %16 {offsets = [0, 0], sizes = [16, 16], strides = [1, 1]} : vector<32x32xbf16> to vector<16x16xbf16>
    %cst_12 = arith.constant dense<0.000000e+00> : vector<16x16xf32>
    %21 = tpu.matmul %19, %20, %cst_12 {dimension_numbers = #tpu.dot_dimension_numbers<[1], [0], [0], [1], [0, 0, 1, 1], [], []>} : vector<16x16xbf16>, vector<16x16xbf16>, vector<16x16xf32> -> vector<16x16xf32>
    %22 = arith.mulf %7, %11 : vector<16x32xf32>
    %23 = arith.mulf %18, %13 : vector<16x32xf32>
    %24 = arith.addf %22, %23 : vector<16x32xf32>
    %cst_13 = arith.constant 0.353553385 : f32
    %25 = vector.broadcast %cst_13 : f32 to vector<16x32xf32>
    %26 = arith.mulf %24, %25 : vector<16x32xf32>
    %27 = arith.mulf %8, %14 : vector<16x16xf32>
    %28 = arith.mulf %21, %15 : vector<16x16xf32>
    %29 = arith.addf %27, %28 : vector<16x16xf32>
    %c0_14 = arith.constant 0 : index
    %c0_15 = arith.constant 0 : index
    %30 = vector.load %arg6[%c0_14, %c0_15] : memref<32x16xf32, #tpu.memory_space<vmem>>, vector<32x16xf32>
    %31 = vector.extract_strided_slice %26 {offsets = [0, 0], sizes = [16, 8], strides = [1, 1]} : vector<16x32xf32> to vector<16x8xf32>
    %32 = vector.extract_strided_slice %26 {offsets = [0, 8], sizes = [16, 8], strides = [1, 1]} : vector<16x32xf32> to vector<16x8xf32>
    %33 = tpu.concatenate %31, %32 in 0 : vector<16x8xf32>, vector<16x8xf32> -> vector<32x8xf32>
    %34 = arith.truncf %33 : vector<32x8xf32> to vector<32x8xbf16>
    %35 = vector.extract_strided_slice %29 {offsets = [0, 0], sizes = [16, 8], strides = [1, 1]} : vector<16x16xf32> to vector<16x8xf32>
    %36 = arith.truncf %35 : vector<16x8xf32> to vector<16x8xbf16>
    %37 = vector.extract_strided_slice %9 {offsets = [0, 0], sizes = [16, 8], strides = [1, 1]} : vector<16x16xf32> to vector<16x8xf32>
    %38 = arith.truncf %37 : vector<16x8xf32> to vector<16x8xbf16>
    %cst_16 = arith.constant dense<0.000000e+00> : vector<32x16xf32>
    %39 = tpu.matmul %34, %36, %cst_16 {dimension_numbers = #tpu.dot_dimension_numbers<[1], [1], [0], [0], [0, 0, 1, 0], [], []>} : vector<32x8xbf16>, vector<16x8xbf16>, vector<32x16xf32> -> vector<32x16xf32>
    %40 = arith.addf %39, %30 : vector<32x16xf32>
    %cst_17 = arith.constant dense<0xFF800000> : vector<32xf32>
    %41 = vector.multi_reduction <maximumf>, %40, %cst_17 [1] : vector<32x16xf32> to vector<32xf32>
    %42 = vector.shape_cast %41 : vector<32xf32> to vector<32x1xf32>
    %43 = vector.broadcast %42 : vector<32x1xf32> to vector<32x16xf32>
    %44 = arith.subf %40, %43 : vector<32x16xf32>
    %45 = math.exp %44 : vector<32x16xf32>
    %cst_18 = arith.constant dense<0.000000e+00> : vector<32xf32>
    %46 = vector.multi_reduction <add>, %45, %cst_18 [1] : vector<32x16xf32> to vector<32xf32>
    %47 = vector.shape_cast %46 : vector<32xf32> to vector<32x1xf32>
    %48 = tpu.reciprocal %47 {approx = true} : vector<32x1xf32> -> vector<32x1xf32>
    %49 = vector.broadcast %48 : vector<32x1xf32> to vector<32x16xf32>
    %50 = arith.mulf %45, %49 : vector<32x16xf32>
    %51 = arith.truncf %50 : vector<32x16xf32> to vector<32x16xbf16>
    %cst_19 = arith.constant dense<0.000000e+00> : vector<32x8xf32>
    %52 = tpu.matmul %51, %38, %cst_19 {dimension_numbers = #tpu.dot_dimension_numbers<[1], [0], [0], [1], [0, 0, 1, 1], [], []>} : vector<32x16xbf16>, vector<16x8xbf16>, vector<32x8xf32> -> vector<32x8xf32>
    %53 = vector.extract_strided_slice %52 {offsets = [0, 0], sizes = [16, 8], strides = [1, 1]} : vector<32x8xf32> to vector<16x8xf32>
    %c0_20 = arith.constant 0 : index
    %c0_21 = arith.constant 0 : index
    %54 = vector.load %arg9[%c0_20, %c0_21] : memref<16x32xf32, #tpu.memory_space<vmem>>, vector<16x8xf32>
    tpu.vector_store %arg9[%c0_20, %c0_21], %53 {strides = array<i32>} : memref<16x32xf32, #tpu.memory_space<vmem>>, vector<16x8xf32>,
    %55 = vector.extract_strided_slice %52 {offsets = [16, 0], sizes = [16, 8], strides = [1, 1]} : vector<32x8xf32> to vector<16x8xf32>
    %c0_22 = arith.constant 0 : index
    %c8 = arith.constant 8 : index
    %56 = vector.load %arg9[%c0_22, %c8] : memref<16x32xf32, #tpu.memory_space<vmem>>, vector<16x8xf32>
    tpu.vector_store %arg9[%c0_22, %c8], %55 {strides = array<i32>} : memref<16x32xf32, #tpu.memory_space<vmem>>, vector<16x8xf32>,
    %57 = vector.extract_strided_slice %26 {offsets = [0, 16], sizes = [16, 8], strides = [1, 1]} : vector<16x32xf32> to vector<16x8xf32>
    %58 = vector.extract_strided_slice %26 {offsets = [0, 24], sizes = [16, 8], strides = [1, 1]} : vector<16x32xf32> to vector<16x8xf32>
    %59 = tpu.concatenate %57, %58 in 0 : vector<16x8xf32>, vector<16x8xf32> -> vector<32x8xf32>
    %60 = arith.truncf %59 : vector<32x8xf32> to vector<32x8xbf16>
    %61 = vector.extract_strided_slice %29 {offsets = [0, 8], sizes = [16, 8], strides = [1, 1]} : vector<16x16xf32> to vector<16x8xf32>
    %62 = arith.truncf %61 : vector<16x8xf32> to vector<16x8xbf16>
    %63 = vector.extract_strided_slice %9 {offsets = [0, 8], sizes = [16, 8], strides = [1, 1]} : vector<16x16xf32> to vector<16x8xf32>
    %64 = arith.truncf %63 : vector<16x8xf32> to vector<16x8xbf16>
    %cst_23 = arith.constant dense<0.000000e+00> : vector<32x16xf32>
    %65 = tpu.matmul %60, %62, %cst_23 {dimension_numbers = #tpu.dot_dimension_numbers<[1], [1], [0], [0], [0, 0, 1, 0], [], []>} : vector<32x8xbf16>, vector<16x8xbf16>, vector<32x16xf32> -> vector<32x16xf32>
    %66 = arith.addf %65, %30 : vector<32x16xf32>
    %cst_24 = arith.constant dense<0xFF800000> : vector<32xf32>
    %67 = vector.multi_reduction <maximumf>, %66, %cst_24 [1] : vector<32x16xf32> to vector<32xf32>
    %68 = vector.shape_cast %67 : vector<32xf32> to vector<32x1xf32>
    %69 = vector.broadcast %68 : vector<32x1xf32> to vector<32x16xf32>
    %70 = arith.subf %66, %69 : vector<32x16xf32>
    %71 = math.exp %70 : vector<32x16xf32>
    %cst_25 = arith.constant dense<0.000000e+00> : vector<32xf32>
    %72 = vector.multi_reduction <add>, %71, %cst_25 [1] : vector<32x16xf32> to vector<32xf32>
    %73 = vector.shape_cast %72 : vector<32xf32> to vector<32x1xf32>
    %74 = tpu.reciprocal %73 {approx = true} : vector<32x1xf32> -> vector<32x1xf32>
    %75 = vector.broadcast %74 : vector<32x1xf32> to vector<32x16xf32>
    %76 = arith.mulf %71, %75 : vector<32x16xf32>
    %77 = arith.truncf %76 : vector<32x16xf32> to vector<32x16xbf16>
    %cst_26 = arith.constant dense<0.000000e+00> : vector<32x8xf32>
    %78 = tpu.matmul %77, %64, %cst_26 {dimension_numbers = #tpu.dot_dimension_numbers<[1], [0], [0], [1], [0, 0, 1, 1], [], []>} : vector<32x16xbf16>, vector<16x8xbf16>, vector<32x8xf32> -> vector<32x8xf32>
    %79 = vector.extract_strided_slice %78 {offsets = [0, 0], sizes = [16, 8], strides = [1, 1]} : vector<32x8xf32> to vector<16x8xf32>
    %c0_27 = arith.constant 0 : index
    %c16 = arith.constant 16 : index
    %80 = vector.load %arg9[%c0_27, %c16] : memref<16x32xf32, #tpu.memory_space<vmem>>, vector<16x8xf32>
    tpu.vector_store %arg9[%c0_27, %c16], %79 {strides = array<i32>} : memref<16x32xf32, #tpu.memory_space<vmem>>, vector<16x8xf32>,
    %81 = vector.extract_strided_slice %78 {offsets = [16, 0], sizes = [16, 8], strides = [1, 1]} : vector<32x8xf32> to vector<16x8xf32>
    %c0_28 = arith.constant 0 : index
    %c24 = arith.constant 24 : index
    %82 = vector.load %arg9[%c0_28, %c24] : memref<16x32xf32, #tpu.memory_space<vmem>>, vector<16x8xf32>
    tpu.vector_store %arg9[%c0_28, %c24], %81 {strides = array<i32>} : memref<16x32xf32, #tpu.memory_space<vmem>>, vector<16x8xf32>,
    %c0_29 = arith.constant 0 : index
    %c0_30 = arith.constant 0 : index
    %83 = vector.load %arg9[%c0_29, %c0_30] : memref<16x32xf32, #tpu.memory_space<vmem>>, vector<16x32xf32>
    %84 = arith.truncf %83 : vector<16x32xf32> to vector<16x32xbf16>
    %c0_31 = arith.constant 0 : index
    %c0_32 = arith.constant 0 : index
    %85 = vector.load %arg7[%c0_31, %c0_32] : memref<32x32xbf16, #tpu.memory_space<vmem>>, vector<32x32xbf16>
    %cst_33 = arith.constant dense<0.000000e+00> : vector<16x32xf32>
    %86 = tpu.matmul %84, %85, %cst_33 {dimension_numbers = #tpu.dot_dimension_numbers<[1], [0], [0], [1], [0, 0, 1, 1], [], []>} : vector<16x32xbf16>, vector<32x32xbf16>, vector<16x32xf32> -> vector<16x32xf32>
    %c0_34 = arith.constant 0 : index
    %c0_35 = arith.constant 0 : index
    %87 = vector.load %arg8[%c0_34, %c0_35] : memref<16x32xf32, #tpu.memory_space<vmem>>, vector<16x32xf32>
    tpu.vector_store %arg8[%c0_34, %c0_35], %86 {strides = array<i32>} : memref<16x32xf32, #tpu.memory_space<vmem>>, vector<16x32xf32>,
    return
  }
}

</mosaic_0001>

<llo_original>
// kernel: tpu_custom_call.1
$region0: #{tpu_custom_call.1}
  #allocation0 [shape = 'u32[]', space=smem, size = 0x4, offset = 0x4, fixed_abs, tag = 'smem constant byte address 0x4 - core index']
  #allocation1 [shape = 'u32[144,128]{1,0:T(1,128)}', space=vmem, size = 0x12000, scoped, tag = 'internal scratch']
  #allocation2 [shape = 'f32[16,32]{1,0:T(8,128)}', space=vmem, size = 0x2000, scoped, tag = 'scratch operand']
  %s0 = inlined_call_operand.vmem [shape: f32[16,32], index: 0, kind: input, shape index: {}]
  %s1 = inlined_call_operand.vmem [shape: f32[16,8], index: 1, kind: input, shape index: {}]
  %s2 = inlined_call_operand.vmem [shape: f32[16,8], index: 2, kind: input, shape index: {}]
  %s3 = inlined_call_operand.vmem [shape: bf16[32,64], index: 3, kind: input, shape index: {}]
  %s4 = inlined_call_operand.vmem [shape: f32[1,64], index: 4, kind: input, shape index: {}]
  %s5 = inlined_call_operand.vmem [shape: bf16[32,32], index: 5, kind: input, shape index: {}]
  %s6 = inlined_call_operand.vmem [shape: f32[32,16], index: 6, kind: input, shape index: {}]
  %s7 = inlined_call_operand.vmem [shape: bf16[32,32], index: 7, kind: input, shape index: {}]
  %s8 = inlined_call_operand.hbm [shape: f32[16,32], index: 8, kind: output, shape index: {}]
  %s9 = sld [smem:[#allocation0]]
  $region42: #{tpu_custom_call.1} parent=0
    _
  %s11 = ssub.s32 1, %s9
  %s12 = scalar_select 0, %s11, %s9
  $region1: #{tpu_custom_call.1} parent=0
    #allocation3 [shape = 'u8[8192]{0}', space=vmem, size = 0x2000, scoped, tag = 'output window, operand 0, single buffered']
    #allocation4 [shape = 's32[1]{0}', space=sflag, size = 0x4, scoped, tag = 'scoped memory for tpu_custom_call.1']
    %13 = vsyncpa [#allocation4], 0
    // Predicated region
    $region2: #{tpu_custom_call.1} parent=1 // pred_check
      _
    $region3: #{tpu_custom_call.1} parent=1 // pred_check_branch
      %15 = sbr.rel (0) target = $region5
    $region4: #{tpu_custom_call.1} parent=1 // pred_region
      _
    $region5: #{tpu_custom_call.1} parent=1 // pred_fallthru
      _
    // Predicated region
    $region6: #{tpu_custom_call.1} parent=1 // pred_check
      _
    $region7: #{tpu_custom_call.1} parent=1 // pred_check_branch
      %17 = sbr.rel (0) target = $region9
    $region8: #{tpu_custom_call.1} parent=1 // pred_region
      _
    $region9: #{tpu_custom_call.1} parent=1 // pred_fallthru
      _
    // Predicated region
    $region10: #{tpu_custom_call.1} parent=1 // pred_check
      _
    $region11: #{tpu_custom_call.1} parent=1 // pred_check_branch
      %19 = sbr.rel (0) target = $region13
    $region12: #{tpu_custom_call.1} parent=1 // pred_region
      _
    $region13: #{tpu_custom_call.1} parent=1 // pred_fallthru
      _
    // Predicated region
    $region14: #{tpu_custom_call.1} parent=1 // pred_check
      _
    $region15: #{tpu_custom_call.1} parent=1 // pred_check_branch
      %21 = sbr.rel (0) target = $region17
    $region16: #{tpu_custom_call.1} parent=1 // pred_region
      _
    $region17: #{tpu_custom_call.1} parent=1 // pred_fallthru
      _
    // Predicated region
    $region18: #{tpu_custom_call.1} parent=1 // pred_check
      _
    $region19: #{tpu_custom_call.1} parent=1 // pred_check_branch
      %23 = sbr.rel (0) target = $region21
    $region20: #{tpu_custom_call.1} parent=1 // pred_region
      _
    $region21: #{tpu_custom_call.1} parent=1 // pred_fallthru
      _
    // Predicated region
    $region22: #{tpu_custom_call.1} parent=1 // pred_check
      _
    $region23: #{tpu_custom_call.1} parent=1 // pred_check_branch
      %25 = sbr.rel (0) target = $region25
    $region24: #{tpu_custom_call.1} parent=1 // pred_region
      _
    $region25: #{tpu_custom_call.1} parent=1 // pred_fallthru
      _
    // Predicated region
    $region26: #{tpu_custom_call.1} parent=1 // pred_check
      _
    $region27: #{tpu_custom_call.1} parent=1 // pred_check_branch
      %27 = sbr.rel (0) target = $region29
    $region28: #{tpu_custom_call.1} parent=1 // pred_region
      _
    $region29: #{tpu_custom_call.1} parent=1 // pred_fallthru
      _
    // Predicated region
    $region30: #{tpu_custom_call.1} parent=1 // pred_check
      _
    $region31: #{tpu_custom_call.1} parent=1 // pred_check_branch
      %29 = sbr.rel (0) target = $region33
    $region32: #{tpu_custom_call.1} parent=1 // pred_region
      _
    $region33: #{tpu_custom_call.1} parent=1 // pred_fallthru
      _
    %v31 = vld [vmem:[%s0] sm:$0xff]
    %v32 = vld [vmem:[%s0 + $0x8] sm:$0xff]
    %v33 = vpack.c.bf16 %v32, %v31
    %v34 = vld [vmem:[%s3] sm:$0xf]
    %v35 = vld [vmem:[%s3 + $0x4] sm:$0xf]
    %v36 = vld [vmem:[%s3 + $0x8] sm:$0xf]
    %v37 = vld [vmem:[%s3 + $0xc] sm:$0xf]
    %v38 = vld [vmem:[%s4] sm:$0x1]
    %v40 = vlaneseq
    %v41 = vshrl.u32 %v40, 7
    %v42 = vsub.s32 0, %v41
    %v43 = vrot.slane %v38, %v42
    %v49 = vunpack.c.l.b16 %v34
    %v50 = vunpack.c.l.b16 %v35
    %v51 = vunpack.c.l.b16 %v36
    %v52 = vunpack.c.l.b16 %v37
    %v53 = vpack.c.b16 %v50, %v49
    %v54 = vpack.c.b16 %v52, %v51
    %vm57 = vcmask 261120
    %v59 = vsel %vm57, %v33, 0
    %61 = vmatprep.subr.bf16.mxu0 0
    %62 = vmatpush1.bf16.msra.mxu0 %v53
    %63 = vmatprep.subr.bf16.mxu0 0
    %64 = vmatpush1.bf16.msra.mxu0 %v54
    %65 = vmatprep.subr.bf16.mxu0 0
    %66 = vmatpush1.bf16.msra.mxu0 0
    %67 = vmatprep.subr.bf16.mxu0 0
    %68 = vmatpush1.bf16.msra.mxu0 0
    %69 = vmatprep.subr.bf16.mxu0 0
    %70 = vmatpush1.bf16.msra.mxu0 0
    %71 = vmatprep.subr.bf16.mxu0 0
    %72 = vmatpush1.bf16.msra.mxu0 0
    %73 = vmatprep.subr.bf16.mxu0 0
    %74 = vmatpush1.bf16.msra.mxu0 0
    %75 = vmatprep.subr.bf16.mxu0 0
    %76 = vmatpush1.bf16.msra.mxu0 0
    %77 = vmatprep.subr.bf16.mxu0 0
    %78 = vmatpush1.bf16.msra.mxu0 0
    %79 = vmatprep.subr.bf16.mxu0 0
    %80 = vmatpush1.bf16.msra.mxu0 0
    %81 = vmatprep.subr.bf16.mxu0 0
    %82 = vmatpush1.bf16.msra.mxu0 0
    %83 = vmatprep.subr.bf16.mxu0 0
    %84 = vmatpush1.bf16.msra.mxu0 0
    %85 = vmatprep.subr.bf16.mxu0 0
    %86 = vmatpush1.bf16.msra.mxu0 0
    %87 = vmatprep.subr.bf16.mxu0 0
    %88 = vmatpush1.bf16.msra.mxu0 0
    %89 = vmatprep.subr.bf16.mxu0 0
    %90 = vmatpush1.bf16.msra.mxu0 0
    %91 = vmatprep.subr.bf16.mxu0 0
    %92 = vmatpush1.bf16.msra.mxu0 0
    %93 = vmatprep.mubr.bf16.mxu0 0
    %94 = vmatmul.mubr.bf16.gmra.mrb[0].mxu0 %v59
    %v95 = vpop.f32.mrb[0].mxu0
    %v96 = vadd.f32 %v43, %v95
    %v97 = vpop.f32.mrb[0].mxu0
    %v98 = vpop.f32.mrb[0].mxu0
    %v99 = vadd.f32 %v43, %v98
    %v100 = vpop.f32.mrb[0].mxu0
    %101 = vdwg.mxu0
    %v102 = vld [vmem:[%s1] sm:$0xff]
    %v103 = vld [vmem:[%s1 + $0x8] sm:$0xff]
    %106 = vrot.lane.b32.xlu0 %v102, 8
    %v107 = vpop.permute.xlu0 %106
    %108 = vrot.lane.b32.xlu0 %v103, 8
    %v109 = vpop.permute.xlu0 %108
    %112 = vrot.lane.b32.xlu0 %v102, 16
    %v113 = vpop.permute.xlu0 %112
    %114 = vrot.lane.b32.xlu0 %v103, 16
    %v115 = vpop.permute.xlu0 %114
    %118 = vrot.lane.b32.xlu0 %v102, 24
    %v119 = vpop.permute.xlu0 %118
    %120 = vrot.lane.b32.xlu0 %v103, 24
    %v121 = vpop.permute.xlu0 %120
    %vm124 = vcmask 64512
    %v125 = vsel %vm124, %v102, %v107
    %v126 = vsel %vm124, %v103, %v109
    %vm127 = vcmask 130048
    %v128 = vsel %vm127, %v125, %v113
    %v129 = vsel %vm127, %v126, %v115
    %vm130 = vcmask 195584
    %v131 = vsel %vm130, %v128, %v119
    %v132 = vsel %vm130, %v129, %v121
    %v133 = vld [vmem:[%s2] sm:$0xff]
    %v134 = vld [vmem:[%s2 + $0x8] sm:$0xff]
    %137 = vrot.lane.b32.xlu0 %v133, 8
    %v138 = vpop.permute.xlu0 %137
    %139 = vrot.lane.b32.xlu0 %v134, 8
    %v140 = vpop.permute.xlu0 %139
    %143 = vrot.lane.b32.xlu0 %v133, 16
    %v144 = vpop.permute.xlu0 %143
    %145 = vrot.lane.b32.xlu0 %v134, 16
    %v146 = vpop.permute.xlu0 %145
    %149 = vrot.lane.b32.xlu0 %v133, 24
    %v150 = vpop.permute.xlu0 %149
    %151 = vrot.lane.b32.xlu0 %v134, 24
    %v152 = vpop.permute.xlu0 %151
    %v155 = vsel %vm124, %v133, %v138
    %v156 = vsel %vm124, %v134, %v140
    %v157 = vsel %vm127, %v155, %v144
    %v158 = vsel %vm127, %v156, %v146
    %v159 = vsel %vm130, %v157, %v150
    %v160 = vsel %vm130, %v158, %v152
    %v161 = vld [vmem:[%s5] sm:$0xf]
    %v162 = vld [vmem:[%s5 + $0x4] sm:$0xf]
    %v163 = vld [vmem:[%s5 + $0x8] sm:$0xf]
    %v164 = vld [vmem:[%s5 + $0xc] sm:$0xf]
    %v165 = vpack.c.bf16 %v99, %v96
    %v170 = vunpack.c.l.b16 %v161
    %v171 = vunpack.c.l.b16 %v162
    %v172 = vunpack.c.l.b16 %v163
    %v173 = vunpack.c.l.b16 %v164
    %v174 = vpack.c.b16 %v171, %v170
    %v175 = vpack.c.b16 %v173, %v172
    %v179 = vsel %vm57, %v165, 0
    %181 = vmatprep.subr.bf16.mxu0 0
    %182 = vmatpush1.bf16.msra.mxu0 %v174
    %183 = vmatprep.subr.bf16.mxu0 0
    %184 = vmatpush1.bf16.msra.mxu0 %v175
    %185 = vmatprep.subr.bf16.mxu0 0
    %186 = vmatpush1.bf16.msra.mxu0 0
    %187 = vmatprep.subr.bf16.mxu0 0
    %188 = vmatpush1.bf16.msra.mxu0 0
    %189 = vmatprep.subr.bf16.mxu0 0
    %190 = vmatpush1.bf16.msra.mxu0 0
    %191 = vmatprep.subr.bf16.mxu0 0
    %192 = vmatpush1.bf16.msra.mxu0 0
    %193 = vmatprep.subr.bf16.mxu0 0
    %194 = vmatpush1.bf16.msra.mxu0 0
    %195 = vmatprep.subr.bf16.mxu0 0
    %196 = vmatpush1.bf16.msra.mxu0 0
    %197 = vmatprep.subr.bf16.mxu0 0
    %198 = vmatpush1.bf16.msra.mxu0 0
    %199 = vmatprep.subr.bf16.mxu0 0
    %200 = vmatpush1.bf16.msra.mxu0 0
    %201 = vmatprep.subr.bf16.mxu0 0
    %202 = vmatpush1.bf16.msra.mxu0 0
    %203 = vmatprep.subr.bf16.mxu0 0
    %204 = vmatpush1.bf16.msra.mxu0 0
    %205 = vmatprep.subr.bf16.mxu0 0
    %206 = vmatpush1.bf16.msra.mxu0 0
    %207 = vmatprep.subr.bf16.mxu0 0
    %208 = vmatpush1.bf16.msra.mxu0 0
    %209 = vmatprep.subr.bf16.mxu0 0
    %210 = vmatpush1.bf16.msra.mxu0 0
    %211 = vmatprep.subr.bf16.mxu0 0
    %212 = vmatpush1.bf16.msra.mxu0 0
    %213 = vmatprep.mubr.bf16.mxu0 0
    %214 = vmatmul.mubr.bf16.gmra.mrb[0].mxu0 %v179
    %v215 = vpop.f32.mrb[0].mxu0
    %v216 = vadd.f32 0.0, %v215
    %v217 = vpop.f32.mrb[0].mxu0
    %v218 = vpop.f32.mrb[0].mxu0
    %v219 = vadd.f32 0.0, %v218
    %v220 = vpop.f32.mrb[0].mxu0
    %221 = vdwg.mxu0
    %223 = vrot.lane.b32.xlu0 %v165, 96
    %v224 = vpop.permute.xlu0 %223
    %v226 = vsel %vm127, %v224, 0
    %228 = vmatprep.subr.bf16.mxu0 0
    %229 = vmatpush1.bf16.msra.mxu0 %v174
    %230 = vmatprep.subr.bf16.mxu0 0
    %231 = vmatpush1.bf16.msra.mxu0 0
    %232 = vmatprep.subr.bf16.mxu0 0
    %233 = vmatpush1.bf16.msra.mxu0 0
    %234 = vmatprep.subr.bf16.mxu0 0
    %235 = vmatpush1.bf16.msra.mxu0 0
    %236 = vmatprep.subr.bf16.mxu0 0
    %237 = vmatpush1.bf16.msra.mxu0 0
    %238 = vmatprep.subr.bf16.mxu0 0
    %239 = vmatpush1.bf16.msra.mxu0 0
    %240 = vmatprep.subr.bf16.mxu0 0
    %241 = vmatpush1.bf16.msra.mxu0 0
    %242 = vmatprep.subr.bf16.mxu0 0
    %243 = vmatpush1.bf16.msra.mxu0 0
    %244 = vmatprep.subr.bf16.mxu0 0
    %245 = vmatpush1.bf16.msra.mxu0 0
    %246 = vmatprep.subr.bf16.mxu0 0
    %247 = vmatpush1.bf16.msra.mxu0 0
    %248 = vmatprep.subr.bf16.mxu0 0
    %249 = vmatpush1.bf16.msra.mxu0 0
    %250 = vmatprep.subr.bf16.mxu0 0
    %251 = vmatpush1.bf16.msra.mxu0 0
    %252 = vmatprep.subr.bf16.mxu0 0
    %253 = vmatpush1.bf16.msra.mxu0 0
    %254 = vmatprep.subr.bf16.mxu0 0
    %255 = vmatpush1.bf16.msra.mxu0 0
    %256 = vmatprep.subr.bf16.mxu0 0
    %257 = vmatpush1.bf16.msra.mxu0 0
    %258 = vmatprep.subr.bf16.mxu0 0
    %259 = vmatpush1.bf16.msra.mxu0 0
    %260 = vmatprep.mubr.bf16.mxu0 0
    %261 = vmatmul.mubr.bf16.gmra.mrb[0].mxu0 %v226
    %v262 = vpop.f32.mrb[0].mxu0
    %v263 = vadd.f32 0.0, %v262
    %v264 = vpop.f32.mrb[0].mxu0
    %v265 = vpop.f32.mrb[0].mxu0
    %v266 = vadd.f32 0.0, %v265
    %v267 = vpop.f32.mrb[0].mxu0
    %268 = vdwg.mxu0
    %v269 = vmul.f32 %v96, %v131
    %v270 = vmul.f32 %v99, %v132
    %v271 = vmul.f32 %v216, %v159
    %v272 = vmul.f32 %v219, %v160
    %v273 = vadd.f32 %v269, %v271
    %v274 = vadd.f32 %v270, %v272
    %v275 = vmul.f32 %v273, 0.35355338
    %v276 = vmul.f32 %v274, 0.35355338
    %279 = vrot.lane.b32.xlu0 %v131, 32
    %v280 = vpop.permute.xlu0 %279
    %281 = vrot.lane.b32.xlu0 %v132, 32
    %v282 = vpop.permute.xlu0 %281
    %v285 = vmul.f32 %v96, %v280
    %v286 = vmul.f32 %v99, %v282
    %v287 = vmul.f32 %v263, %v159
    %v288 = vmul.f32 %v266, %v160
    %291 = vrot.lane.b32.xlu0 %v287, 32
    %v292 = vpop.permute.xlu0 %291
    %293 = vrot.lane.b32.xlu0 %v288, 32
    %v294 = vpop.permute.xlu0 %293
    %v297 = vadd.f32 %v285, %v292
    %v298 = vadd.f32 %v286, %v294
    %v299 = vld [vmem:[%s6] sm:$0xff]
    %v300 = vld [vmem:[%s6 + $0x8] sm:$0xff]
    %v301 = vld [vmem:[%s6 + $0x10] sm:$0xff]
    %v302 = vld [vmem:[%s6 + $0x18] sm:$0xff]
    %305 = vrot.lane.b32.xlu0 %v275, 120
    %v306 = vpop.permute.xlu0 %305
    %307 = vrot.lane.b32.xlu0 %v276, 120
    %v308 = vpop.permute.xlu0 %307
    %v311 = vpack.c.bf16 %v276, %v275
    %v312 = vpack.c.bf16 %v308, %v306
    %v313 = vpack.c.bf16 %v298, %v297
    %315 = vrot.lane.b32.xlu0 %v313, 96
    %v316 = vpop.permute.xlu0 %315
    %v318 = vsel %vm124, %v311, 0
    %v321 = vsel %vm124, %v312, 0
    %v324 = vsel %vm124, %v316, 0
    %326 = vmatprep.subr.bf16.mxu0 0
    %327 = vmatpush1.bf16.xpose.msra.mxu0 %v324
    %328 = vmatprep.subr.bf16.mxu0 0
    %329 = vmatpush1.bf16.xpose.msra.mxu0 0
    %330 = vmatprep.subr.bf16.mxu0 0
    %331 = vmatpush1.bf16.xpose.msra.mxu0 0
    %332 = vmatprep.subr.bf16.mxu0 0
    %333 = vmatpush1.bf16.xpose.msra.mxu0 0
    %334 = vmatprep.subr.bf16.mxu0 0
    %335 = vmatpush1.bf16.xpose.msra.mxu0 0
    %336 = vmatprep.subr.bf16.mxu0 0
    %337 = vmatpush1.bf16.xpose.msra.mxu0 0
    %338 = vmatprep.subr.bf16.mxu0 0
    %339 = vmatpush1.bf16.xpose.msra.mxu0 0
    %340 = vmatprep.subr.bf16.mxu0 0
    %341 = vmatpush1.bf16.xpose.msra.mxu0 0
    %342 = vmatprep.subr.bf16.mxu0 0
    %343 = vmatpush1.bf16.xpose.msra.mxu0 0
    %344 = vmatprep.subr.bf16.mxu0 0
    %345 = vmatpush1.bf16.xpose.msra.mxu0 0
    %346 = vmatprep.subr.bf16.mxu0 0
    %347 = vmatpush1.bf16.xpose.msra.mxu0 0
    %348 = vmatprep.subr.bf16.mxu0 0
    %349 = vmatpush1.bf16.xpose.msra.mxu0 0
    %350 = vmatprep.subr.bf16.mxu0 0
    %351 = vmatpush1.bf16.xpose.msra.mxu0 0
    %352 = vmatprep.subr.bf16.mxu0 0
    %353 = vmatpush1.bf16.xpose.msra.mxu0 0
    %354 = vmatprep.subr.bf16.mxu0 0
    %355 = vmatpush1.bf16.xpose.msra.mxu0 0
    %356 = vmatprep.subr.bf16.mxu0 0
    %357 = vmatpush1.bf16.xpose.msra.mxu0 0
    %358 = vmatprep.mubr.bf16.mxu0 0
    %359 = vmatmul.mubr.bf16.gmra.mrb[0].mxu0 %v318
    %v360 = vpop.f32.mrb[0].mxu0
    %v361 = vadd.f32 %v299, %v360
    %v362 = vpop.f32.mrb[0].mxu0
    %v363 = vpop.f32.mrb[0].mxu0
    %v364 = vadd.f32 %v300, %v363
    %v365 = vpop.f32.mrb[0].mxu0
    %366 = vmatprep.mubr.bf16.mxu0 0
    %367 = vmatmul.mubr.bf16.gmra.mrb[0].mxu0 %v321
    %v368 = vpop.f32.mrb[0].mxu0
    %v369 = vadd.f32 %v301, %v368
    %v370 = vpop.f32.mrb[0].mxu0
    %v371 = vpop.f32.mrb[0].mxu0
    %v372 = vadd.f32 %v302, %v371
    %v373 = vpop.f32.mrb[0].mxu0
    %374 = vdwg.mxu0
    %v375 = vsel %vm127, %v361, -inf
    %376 = vmax.xlane.f32.xlu0 %v375
    %v377 = vpop.xlane.xlu0 %376
    %v378 = vsel %vm127, %v364, -inf
    %379 = vmax.xlane.f32.xlu0 %v378
    %v380 = vpop.xlane.xlu0 %379
    %v381 = vsel %vm127, %v369, -inf
    %382 = vmax.xlane.f32.xlu0 %v381
    %v383 = vpop.xlane.xlu0 %382
    %v384 = vsel %vm127, %v372, -inf
    %385 = vmax.xlane.f32.xlu0 %v384
    %v386 = vpop.xlane.xlu0 %385
    %v387 = vsub.f32 %v361, %v377
    %v388 = vsub.f32 %v364, %v380
    %v389 = vsub.f32 %v369, %v383
    %v390 = vsub.f32 %v372, %v386
    %v391 = vmul.f32 %v387, 1.442695
    %v392 = vpow.pop %v391
    %v393 = vmul.f32 %v388, 1.442695
    %v394 = vpow.pop %v393
    %v395 = vmul.f32 %v389, 1.442695
    %v396 = vpow.pop %v395
    %v397 = vmul.f32 %v390, 1.442695
    %v398 = vpow.pop %v397
    %v399 = vsel %vm127, %v392, 0.0
    %400 = vadd.xlane.f32.xlu0 %v399
    %v401 = vpop.xlane.xlu0 %400
    %v402 = vsel %vm127, %v394, 0.0
    %403 = vadd.xlane.f32.xlu0 %v402
    %v404 = vpop.xlane.xlu0 %403
    %v405 = vsel %vm127, %v396, 0.0
    %406 = vadd.xlane.f32.xlu0 %v405
    %v407 = vpop.xlane.xlu0 %406
    %v408 = vsel %vm127, %v398, 0.0
    %409 = vadd.xlane.f32.xlu0 %v408
    %v410 = vpop.xlane.xlu0 %409
    %v411 = vrcp.pop %v401
    %v412 = vrcp.pop %v404
    %v413 = vrcp.pop %v407
    %v414 = vrcp.pop %v410
    %v415 = vmul.f32 %v392, %v411
    %v416 = vmul.f32 %v394, %v412
    %v417 = vmul.f32 %v396, %v413
    %v418 = vmul.f32 %v398, %v414
    %v419 = vpack.c.bf16 %v416, %v415
    %v420 = vpack.c.bf16 %v418, %v417
    %421 = vrot.lane.b32.xlu0 %v165, 80
    %v422 = vpop.permute.xlu0 %421
    %v425 = vsel %vm127, %v419, 0
    %v428 = vsel %vm127, %v420, 0
    %430 = vmatprep.subr.bf16.mxu0 0
    %431 = vmatpush1.bf16.msra.mxu0 %v422
    %432 = vmatprep.subr.bf16.mxu0 0
    %433 = vmatpush1.bf16.msra.mxu0 0
    %434 = vmatprep.subr.bf16.mxu0 0
    %435 = vmatpush1.bf16.msra.mxu0 0
    %436 = vmatprep.subr.bf16.mxu0 0
    %437 = vmatpush1.bf16.msra.mxu0 0
    %438 = vmatprep.subr.bf16.mxu0 0
    %439 = vmatpush1.bf16.msra.mxu0 0
    %440 = vmatprep.subr.bf16.mxu0 0
    %441 = vmatpush1.bf16.msra.mxu0 0
    %442 = vmatprep.subr.bf16.mxu0 0
    %443 = vmatpush1.bf16.msra.mxu0 0
    %444 = vmatprep.subr.bf16.mxu0 0
    %445 = vmatpush1.bf16.msra.mxu0 0
    %446 = vmatprep.subr.bf16.mxu0 0
    %447 = vmatpush1.bf16.msra.mxu0 0
    %448 = vmatprep.subr.bf16.mxu0 0
    %449 = vmatpush1.bf16.msra.mxu0 0
    %450 = vmatprep.subr.bf16.mxu0 0
    %451 = vmatpush1.bf16.msra.mxu0 0
    %452 = vmatprep.subr.bf16.mxu0 0
    %453 = vmatpush1.bf16.msra.mxu0 0
    %454 = vmatprep.subr.bf16.mxu0 0
    %455 = vmatpush1.bf16.msra.mxu0 0
    %456 = vmatprep.subr.bf16.mxu0 0
    %457 = vmatpush1.bf16.msra.mxu0 0
    %458 = vmatprep.subr.bf16.mxu0 0
    %459 = vmatpush1.bf16.msra.mxu0 0
    %460 = vmatprep.subr.bf16.mxu0 0
    %461 = vmatpush1.bf16.msra.mxu0 0
    %462 = vmatprep.mubr.bf16.mxu0 0
    %463 = vmatmul.mubr.bf16.gmra.mrb[0].mxu0 %v425
    %v464 = vpop.f32.mrb[0].mxu0
    %v465 = vadd.f32 0.0, %v464
    %v466 = vpop.f32.mrb[0].mxu0
    %v467 = vpop.f32.mrb[0].mxu0
    %v468 = vadd.f32 0.0, %v467
    %v469 = vpop.f32.mrb[0].mxu0
    %470 = vmatprep.mubr.bf16.mxu0 0
    %471 = vmatmul.mubr.bf16.gmra.mrb[0].mxu0 %v428
    %v472 = vpop.f32.mrb[0].mxu0
    %v473 = vadd.f32 0.0, %v472
    %v474 = vpop.f32.mrb[0].mxu0
    %v475 = vpop.f32.mrb[0].mxu0
    %v476 = vadd.f32 0.0, %v475
    %v477 = vpop.f32.mrb[0].mxu0
    %478 = vdwg.mxu0
    %479 = vst.msk [vmem:[#allocation2] sm:$0xff] %vm124, %v465
    %480 = vst.msk [vmem:[#allocation2 + $0x8] sm:$0xff] %vm124, %v468
    %483 = vrot.lane.b32.xlu0 %v473, 8
    %v484 = vpop.permute.xlu0 %483
    %485 = vrot.lane.b32.xlu0 %v476, 8
    %v486 = vpop.permute.xlu0 %485
    %vm489 = vcmask 130112
    %490 = vst.msk [vmem:[#allocation2] sm:$0xff] %vm489, %v484
    %491 = vst.msk [vmem:[#allocation2 + $0x8] sm:$0xff] %vm489, %v486
    %494 = vrot.lane.b32.xlu0 %v311, 112
    %v495 = vpop.permute.xlu0 %494
    %496 = vrot.lane.b32.xlu0 %v312, 112
    %v497 = vpop.permute.xlu0 %496
    %498 = vrot.lane.b32.xlu0 %v313, 88
    %v499 = vpop.permute.xlu0 %498
    %v501 = vsel %vm124, %v495, 0
    %v504 = vsel %vm124, %v497, 0
    %v507 = vsel %vm124, %v499, 0
    %509 = vmatprep.subr.bf16.mxu0 0
    %510 = vmatpush1.bf16.xpose.msra.mxu0 %v507
    %511 = vmatprep.subr.bf16.mxu0 0
    %512 = vmatpush1.bf16.xpose.msra.mxu0 0
    %513 = vmatprep.subr.bf16.mxu0 0
    %514 = vmatpush1.bf16.xpose.msra.mxu0 0
    %515 = vmatprep.subr.bf16.mxu0 0
    %516 = vmatpush1.bf16.xpose.msra.mxu0 0
    %517 = vmatprep.subr.bf16.mxu0 0
    %518 = vmatpush1.bf16.xpose.msra.mxu0 0
    %519 = vmatprep.subr.bf16.mxu0 0
    %520 = vmatpush1.bf16.xpose.msra.mxu0 0
    %521 = vmatprep.subr.bf16.mxu0 0
    %522 = vmatpush1.bf16.xpose.msra.mxu0 0
    %523 = vmatprep.subr.bf16.mxu0 0
    %524 = vmatpush1.bf16.xpose.msra.mxu0 0
    %525 = vmatprep.subr.bf16.mxu0 0
    %526 = vmatpush1.bf16.xpose.msra.mxu0 0
    %527 = vmatprep.subr.bf16.mxu0 0
    %528 = vmatpush1.bf16.xpose.msra.mxu0 0
    %529 = vmatprep.subr.bf16.mxu0 0
    %530 = vmatpush1.bf16.xpose.msra.mxu0 0
    %531 = vmatprep.subr.bf16.mxu0 0
    %532 = vmatpush1.bf16.xpose.msra.mxu0 0
    %533 = vmatprep.subr.bf16.mxu0 0
    %534 = vmatpush1.bf16.xpose.msra.mxu0 0
    %535 = vmatprep.subr.bf16.mxu0 0
    %536 = vmatpush1.bf16.xpose.msra.mxu0 0
    %537 = vmatprep.subr.bf16.mxu0 0
    %538 = vmatpush1.bf16.xpose.msra.mxu0 0
    %539 = vmatprep.subr.bf16.mxu0 0
    %540 = vmatpush1.bf16.xpose.msra.mxu0 0
    %541 = vmatprep.mubr.bf16.mxu0 0
    %542 = vmatmul.mubr.bf16.gmra.mrb[0].mxu0 %v501
    %v543 = vpop.f32.mrb[0].mxu0
    %v544 = vadd.f32 %v299, %v543
    %v545 = vpop.f32.mrb[0].mxu0
    %v546 = vpop.f32.mrb[0].mxu0
    %v547 = vadd.f32 %v300, %v546
    %v548 = vpop.f32.mrb[0].mxu0
    %549 = vmatprep.mubr.bf16.mxu0 0
    %550 = vmatmul.mubr.bf16.gmra.mrb[0].mxu0 %v504
    %v551 = vpop.f32.mrb[0].mxu0
    %v552 = vadd.f32 %v301, %v551
    %v553 = vpop.f32.mrb[0].mxu0
    %v554 = vpop.f32.mrb[0].mxu0
    %v555 = vadd.f32 %v302, %v554
    %v556 = vpop.f32.mrb[0].mxu0
    %557 = vdwg.mxu0
    %v558 = vsel %vm127, %v544, -inf
    %559 = vmax.xlane.f32.xlu0 %v558
    %v560 = vpop.xlane.xlu0 %559
    %v561 = vsel %vm127, %v547, -inf
    %562 = vmax.xlane.f32.xlu0 %v561
    %v563 = vpop.xlane.xlu0 %562
    %v564 = vsel %vm127, %v552, -inf
    %565 = vmax.xlane.f32.xlu0 %v564
    %v566 = vpop.xlane.xlu0 %565
    %v567 = vsel %vm127, %v555, -inf
    %568 = vmax.xlane.f32.xlu0 %v567
    %v569 = vpop.xlane.xlu0 %568
    %v570 = vsub.f32 %v544, %v560
    %v571 = vsub.f32 %v547, %v563
    %v572 = vsub.f32 %v552, %v566
    %v573 = vsub.f32 %v555, %v569
    %v574 = vmul.f32 %v570, 1.442695
    %v575 = vpow.pop %v574
    %v576 = vmul.f32 %v571, 1.442695
    %v577 = vpow.pop %v576
    %v578 = vmul.f32 %v572, 1.442695
    %v579 = vpow.pop %v578
    %v580 = vmul.f32 %v573, 1.442695
    %v581 = vpow.pop %v580
    %v582 = vsel %vm127, %v575, 0.0
    %583 = vadd.xlane.f32.xlu0 %v582
    %v584 = vpop.xlane.xlu0 %583
    %v585 = vsel %vm127, %v577, 0.0
    %586 = vadd.xlane.f32.xlu0 %v585
    %v587 = vpop.xlane.xlu0 %586
    %v588 = vsel %vm127, %v579, 0.0
    %589 = vadd.xlane.f32.xlu0 %v588
    %v590 = vpop.xlane.xlu0 %589
    %v591 = vsel %vm127, %v581, 0.0
    %592 = vadd.xlane.f32.xlu0 %v591
    %v593 = vpop.xlane.xlu0 %592
    %v594 = vrcp.pop %v584
    %v595 = vrcp.pop %v587
    %v596 = vrcp.pop %v590
    %v597 = vrcp.pop %v593
    %v598 = vmul.f32 %v575, %v594
    %v599 = vmul.f32 %v577, %v595
    %v600 = vmul.f32 %v579, %v596
    %v601 = vmul.f32 %v581, %v597
    %v602 = vpack.c.bf16 %v599, %v598
    %v603 = vpack.c.bf16 %v601, %v600
    %604 = vrot.lane.b32.xlu0 %v165, 72
    %v605 = vpop.permute.xlu0 %604
    %v608 = vsel %vm127, %v602, 0
    %v611 = vsel %vm127, %v603, 0
    %613 = vmatprep.subr.bf16.mxu0 0
    %614 = vmatpush1.bf16.msra.mxu0 %v605
    %615 = vmatprep.subr.bf16.mxu0 0
    %616 = vmatpush1.bf16.msra.mxu0 0
    %617 = vmatprep.subr.bf16.mxu0 0
    %618 = vmatpush1.bf16.msra.mxu0 0
    %619 = vmatprep.subr.bf16.mxu0 0
    %620 = vmatpush1.bf16.msra.mxu0 0
    %621 = vmatprep.subr.bf16.mxu0 0
    %622 = vmatpush1.bf16.msra.mxu0 0
    %623 = vmatprep.subr.bf16.mxu0 0
    %624 = vmatpush1.bf16.msra.mxu0 0
    %625 = vmatprep.subr.bf16.mxu0 0
    %626 = vmatpush1.bf16.msra.mxu0 0
    %627 = vmatprep.subr.bf16.mxu0 0
    %628 = vmatpush1.bf16.msra.mxu0 0
    %629 = vmatprep.subr.bf16.mxu0 0
    %630 = vmatpush1.bf16.msra.mxu0 0
    %631 = vmatprep.subr.bf16.mxu0 0
    %632 = vmatpush1.bf16.msra.mxu0 0
    %633 = vmatprep.subr.bf16.mxu0 0
    %634 = vmatpush1.bf16.msra.mxu0 0
    %635 = vmatprep.subr.bf16.mxu0 0
    %636 = vmatpush1.bf16.msra.mxu0 0
    %637 = vmatprep.subr.bf16.mxu0 0
    %638 = vmatpush1.bf16.msra.mxu0 0
    %639 = vmatprep.subr.bf16.mxu0 0
    %640 = vmatpush1.bf16.msra.mxu0 0
    %641 = vmatprep.subr.bf16.mxu0 0
    %642 = vmatpush1.bf16.msra.mxu0 0
    %643 = vmatprep.subr.bf16.mxu0 0
    %644 = vmatpush1.bf16.msra.mxu0 0
    %645 = vmatprep.mubr.bf16.mxu0 0
    %646 = vmatmul.mubr.bf16.gmra.mrb[0].mxu0 %v608
    %v647 = vpop.f32.mrb[0].mxu0
    %v648 = vadd.f32 0.0, %v647
    %v649 = vpop.f32.mrb[0].mxu0
    %v650 = vpop.f32.mrb[0].mxu0
    %v651 = vadd.f32 0.0, %v650
    %v652 = vpop.f32.mrb[0].mxu0
    %653 = vmatprep.mubr.bf16.mxu0 0
    %654 = vmatmul.mubr.bf16.gmra.mrb[0].mxu0 %v611
    %v655 = vpop.f32.mrb[0].mxu0
    %v656 = vadd.f32 0.0, %v655
    %v657 = vpop.f32.mrb[0].mxu0
    %v658 = vpop.f32.mrb[0].mxu0
    %v659 = vadd.f32 0.0, %v658
    %v660 = vpop.f32.mrb[0].mxu0
    %661 = vdwg.mxu0
    %664 = vrot.lane.b32.xlu0 %v648, 16
    %v665 = vpop.permute.xlu0 %664
    %666 = vrot.lane.b32.xlu0 %v651, 16
    %v667 = vpop.permute.xlu0 %666
    %vm670 = vcmask 195712
    %671 = vst.msk [vmem:[#allocation2] sm:$0xff] %vm670, %v665
    %672 = vst.msk [vmem:[#allocation2 + $0x8] sm:$0xff] %vm670, %v667
    %675 = vrot.lane.b32.xlu0 %v656, 24
    %v676 = vpop.permute.xlu0 %675
    %677 = vrot.lane.b32.xlu0 %v659, 24
    %v678 = vpop.permute.xlu0 %677
    %vm681 = vcmask 261312
    %682 = vst.msk [vmem:[#allocation2] sm:$0xff] %vm681, %v676
    %683 = vst.msk [vmem:[#allocation2 + $0x8] sm:$0xff] %vm681, %v678
    %v684 = vld [vmem:[#allocation2] sm:$0xff]
    %v685 = vld [vmem:[#allocation2 + $0x8] sm:$0xff]
    %v686 = vpack.c.bf16 %v685, %v684
    %v687 = vld [vmem:[%s7] sm:$0xf]
    %v688 = vld [vmem:[%s7 + $0x4] sm:$0xf]
    %v689 = vld [vmem:[%s7 + $0x8] sm:$0xf]
    %v690 = vld [vmem:[%s7 + $0xc] sm:$0xf]
    %v695 = vunpack.c.l.b16 %v687
    %v696 = vunpack.c.l.b16 %v688
    %v697 = vunpack.c.l.b16 %v689
    %v698 = vunpack.c.l.b16 %v690
    %v699 = vpack.c.b16 %v696, %v695
    %v700 = vpack.c.b16 %v698, %v697
    %v704 = vsel %vm57, %v686, 0
    %706 = vmatprep.subr.bf16.mxu0 0
    %707 = vmatpush1.bf16.msra.mxu0 %v699
    %708 = vmatprep.subr.bf16.mxu0 0
    %709 = vmatpush1.bf16.msra.mxu0 %v700
    %710 = vmatprep.subr.bf16.mxu0 0
    %711 = vmatpush1.bf16.msra.mxu0 0
    %712 = vmatprep.subr.bf16.mxu0 0
    %713 = vmatpush1.bf16.msra.mxu0 0
    %714 = vmatprep.subr.bf16.mxu0 0
    %715 = vmatpush1.bf16.msra.mxu0 0
    %716 = vmatprep.subr.bf16.mxu0 0
    %717 = vmatpush1.bf16.msra.mxu0 0
    %718 = vmatprep.subr.bf16.mxu0 0
    %719 = vmatpush1.bf16.msra.mxu0 0
    %720 = vmatprep.subr.bf16.mxu0 0
    %721 = vmatpush1.bf16.msra.mxu0 0
    %722 = vmatprep.subr.bf16.mxu0 0
    %723 = vmatpush1.bf16.msra.mxu0 0
    %724 = vmatprep.subr.bf16.mxu0 0
    %725 = vmatpush1.bf16.msra.mxu0 0
    %726 = vmatprep.subr.bf16.mxu0 0
    %727 = vmatpush1.bf16.msra.mxu0 0
    %728 = vmatprep.subr.bf16.mxu0 0
    %729 = vmatpush1.bf16.msra.mxu0 0
    %730 = vmatprep.subr.bf16.mxu0 0
    %731 = vmatpush1.bf16.msra.mxu0 0
    %732 = vmatprep.subr.bf16.mxu0 0
    %733 = vmatpush1.bf16.msra.mxu0 0
    %734 = vmatprep.subr.bf16.mxu0 0
    %735 = vmatpush1.bf16.msra.mxu0 0
    %736 = vmatprep.subr.bf16.mxu0 0
    %737 = vmatpush1.bf16.msra.mxu0 0
    %738 = vmatprep.mubr.bf16.mxu0 0
    %739 = vmatmul.mubr.bf16.gmra.mrb[0].mxu0 %v704
    %v740 = vpop.f32.mrb[0].mxu0
    %v741 = vadd.f32 0.0, %v740
    %v742 = vpop.f32.mrb[0].mxu0
    %v743 = vpop.f32.mrb[0].mxu0
    %v744 = vadd.f32 0.0, %v743
    %v745 = vpop.f32.mrb[0].mxu0
    %746 = vdwg.mxu0
    %747 = vst.msk [vmem:[#allocation3] sm:$0xff] %vm57, %v741
    %748 = vst.msk [vmem:[#allocation3 + $0x8] sm:$0xff] %vm57, %v744
    // Predicated region
    $region34: #{tpu_custom_call.1} parent=1 // pred_check
      _
    $region35: #{tpu_custom_call.1} parent=1 // pred_check_branch
      %750 = sbr.rel (0) target = $region37
    $region36: #{tpu_custom_call.1} parent=1 // pred_region
      %s752 = ssub.s32 256, 256
      %753 = vsyncadd [#allocation4], %s752
      %s754 = sshll.u32 [#allocation3], 4
      %s755 = int_to_ptr.vmem [resolvable:$true] %s754
      %760 = dma.vmem_to_hbm [thread:$0]  %s755, 256, %s8, [#allocation4], 128, 128, 8
    $region37: #{tpu_custom_call.1} parent=1 // pred_fallthru
      _
    // Predicated region
    $region38: #{tpu_custom_call.1} parent=1 // pred_check
      _
    $region39: #{tpu_custom_call.1} parent=1 // pred_check_branch
      %762 = sbr.rel (0) target = $region41
    $region40: #{tpu_custom_call.1} parent=1 // pred_region
      %763 = dma.done [#allocation4], 256
    $region41: #{tpu_custom_call.1} parent=1 // pred_fallthru
      _
    %764 = vsyncpa [#allocation4], 1

</llo_original>
